<compile_context>
chip_gen: v7x
topology: tpu7x:2x2x1
jax: 0.10.0
libtpu: 0.0.40
codegen_flags: <defaults>
</compile_context>

<pallas_src>
import functools

import jax
import jax.numpy as jnp
import numpy as np
from jax.experimental import pallas as pl
from jax.experimental.pallas import tpu as pltpu


# ----- "opt" configuration (small, deterministic) -----
L = 8            # number of channel taps
DECAY = 4.0      # power decay constant
M = 64           # FFT size / number of subcarriers
K = 16           # cyclic prefix length
P = 4            # pilots / streams per sample
N = 2            # batch size
SMK = M + K      # per-(N,P) time-domain signal length (input dim 2)
OUT_LEN = SMK + L - 1   # full-convolution output length (= 87)

CONV_W = 128            # lane width reserved for the conv segment / signal frame
SLAB_W = 2 * CONV_W     # total output slab width: [conv | H_true | zero tail]


def channel_kernel(sig_ref, tap_ref, dft_ref, out_ref, pad_ref, *,
                   b, num_taps, sig_len, n_sub):
    """Complex full convolution + DFT-of-taps, fused in one kernel.

    sig_ref : (2B, SMK)    rows [0:B] real, [B:2B] imag signal (un-padded)
    tap_ref : (2B, L)      rows [0:B] real, [B:2B] imag taps (un-flipped)
    dft_ref : (L, 2M)      lanes [0:M) cos basis, [M:2M) -sin basis
    out_ref : (2B, SLAB_W) lanes [0:128) conv, [128:128+M) H_true, rest zero
    pad_ref : (2B, SLAB_W) VMEM scratch (zero-padded signal frame)
    """
    # ---- in-kernel zero padding: place the signal at lane offset CONV_W ----
    pad_ref[...] = jnp.zeros_like(pad_ref)
    pad_ref[:, CONV_W:CONV_W + sig_len] = sig_ref[...]
    spad = pad_ref[...]                          # (2B, 2*CONV_W), loaded once

    taps = tap_ref[...]                          # (2B, L), loaded once
    wr, wi = taps[0:b, :], taps[b:2 * b, :]      # (B, L) each

    # ---- complex full convolution: out[t] = sum_k cof[k] * x[t - k] ----
    # window_k[t] = spad[t + CONV_W - k] = x[t - k] (zero outside [0, sig_len))
    acc_r = jnp.zeros((b, CONV_W), jnp.float32)
    acc_i = jnp.zeros((b, CONV_W), jnp.float32)
    for k in range(num_taps):                    # static tap loop
        win = spad[:, CONV_W - k:2 * CONV_W - k]   # (2B, CONV_W) static slice
        xr, xi = win[0:b, :], win[b:2 * b, :]
        cr = wr[:, k:k + 1]                      # (B, 1) tap coefficient
        ci = wi[:, k:k + 1]
        acc_r = acc_r + cr * xr - ci * xi
        acc_i = acc_i + cr * xi + ci * xr
    out_ref[0:b, 0:CONV_W] = acc_r               # aligned full-tile stores
    out_ref[b:2 * b, 0:CONV_W] = acc_i

    # ---- H_true: ONE MXU matmul (2B, L) @ (L, 2M), f32 accumulation ----
    res = jnp.dot(taps, dft_ref[...], preferred_element_type=jnp.float32)
    t_cos = res[:, 0:n_sub]                      # (wr|wi) @ cos
    t_msin = res[:, n_sub:2 * n_sub]             # (wr|wi) @ (-sin)
    hr = t_cos[0:b, :] - t_msin[b:2 * b, :]      # Re: wr@cos + wi@sin
    hi = t_msin[0:b, :] + t_cos[b:2 * b, :]      # Im: wi@cos - wr@sin
    out_ref[0:b, CONV_W:CONV_W + n_sub] = hr
    out_ref[b:2 * b, CONV_W:CONV_W + n_sub] = hi
    if CONV_W + n_sub < SLAB_W:                  # deterministic zero tail
        out_ref[:, CONV_W + n_sub:SLAB_W] = jnp.zeros(
            (2 * b, SLAB_W - CONV_W - n_sub), jnp.float32)


@jax.jit
def channel_forward(inp, cof):
    """inp: (N,P,SMK,2), cof: (N,P,L,2) -> (output (N,P,SMK+L-1,2), H_true (N,P,M,2))."""
    n, p, smk, _ = inp.shape
    num_taps = cof.shape[2]
    b = n * p
    out_len = smk + num_taps - 1
    assert out_len <= CONV_W and smk <= CONV_W and M <= CONV_W

    # planar real/imag packing on the sublane axis -> one DMA stream per tensor
    sig = jnp.concatenate(
        [inp[..., 0].reshape(b, smk), inp[..., 1].reshape(b, smk)],
        axis=0).astype(jnp.float32)                          # (2B, SMK)
    taps = jnp.concatenate(
        [cof[..., 0].reshape(b, num_taps), cof[..., 1].reshape(b, num_taps)],
        axis=0).astype(jnp.float32)                          # (2B, L), un-flipped

    # negative-exponent DFT basis, packed on lanes (constant-folded by XLA)
    l_idx = jnp.arange(num_taps, dtype=jnp.float32)[:, None]
    m_idx = jnp.arange(M, dtype=jnp.float32)[None, :]
    ang = 2.0 * jnp.pi * l_idx * m_idx / float(M)
    dft = jnp.concatenate([jnp.cos(ang), -jnp.sin(ang)], axis=1)   # (L, 2M)

    kernel = functools.partial(channel_kernel, b=b, num_taps=num_taps,
                               sig_len=smk, n_sub=M)

    slab = pl.pallas_call(
        kernel,
        grid=(1,),
        in_specs=[
            pl.BlockSpec((2 * b, smk), lambda i: (0, 0)),
            pl.BlockSpec((2 * b, num_taps), lambda i: (0, 0)),
            pl.BlockSpec((num_taps, 2 * M), lambda i: (0, 0)),
        ],
        out_specs=pl.BlockSpec((2 * b, SLAB_W), lambda i: (0, 0)),
        out_shape=jax.ShapeDtypeStruct((2 * b, SLAB_W), jnp.float32),
        scratch_shapes=[pltpu.VMEM((2 * b, SLAB_W), jnp.float32)],
        compiler_params=pltpu.CompilerParams(
            dimension_semantics=("arbitrary",)),
    )(sig, taps, dft)

    o_r = slab[0:b, 0:out_len]
    o_i = slab[b:2 * b, 0:out_len]
    h_r = slab[0:b, CONV_W:CONV_W + M]
    h_i = slab[b:2 * b, CONV_W:CONV_W + M]
    # (..., 2) interleave kept only to preserve the module's return layout.
    output = jnp.stack([o_r, o_i], axis=-1).reshape(n, p, out_len, 2)
    h_true = jnp.stack([h_r, h_i], axis=-1).reshape(n, p, M, 2)
    return output, h_true


def _reference(inp, cof):
    """NumPy reference matching the PyTorch forward."""
    inp = np.asarray(inp, dtype=np.float64)
    cof = np.asarray(cof, dtype=np.float64)
    n, p, smk, _ = inp.shape
    sig_c = inp[..., 0] + 1j * inp[..., 1]           # (N,P,SMK)
    cof_c = cof[..., 0] + 1j * cof[..., 1]           # (N,P,L)
    out = np.zeros((n, p, smk + L - 1), dtype=np.complex128)
    for a in range(n):
        for q in range(p):
            out[a, q] = np.convolve(sig_c[a, q], cof_c[a, q], mode="full")
    cof_true = np.concatenate([cof_c, np.zeros((n, p, M - L))], axis=-1)
    h_true = np.fft.fft(cof_true, axis=-1)
    out2 = np.stack([out.real, out.imag], axis=-1)
    h2 = np.stack([h_true.real, h_true.imag], axis=-1)
    return out2, h2


if __name__ == "__main__":
    key = jax.random.PRNGKey(0)
    k_inp, k_cof = jax.random.split(key)

    # deterministic example input (N, P, SMK, 2)
    x = jax.random.normal(k_inp, (N, P, SMK, 2), dtype=jnp.float32)

    # power-delay profile and channel taps (Channel.__init__ / forward with cof=None)
    power = jnp.exp(-jnp.arange(L, dtype=jnp.float32) / DECAY)
    power = power / jnp.sum(power)                               # (L,)
    cof = jnp.sqrt(power / 2.0)[None, None, :, None] * \
          jax.random.normal(k_cof, (N, P, L, 2), dtype=jnp.float32)

    output, h_true = channel_forward(x, cof)
    jax.block_until_ready((output, h_true))

    assert output.shape == (N, P, SMK + L - 1, 2)
    assert h_true.shape == (N, P, M, 2)

    ref_out, ref_h = _reference(x, cof)
    np.testing.assert_allclose(np.asarray(output), ref_out, rtol=1e-4, atol=1e-4)
    np.testing.assert_allclose(np.asarray(h_true), ref_h, rtol=1e-4, atol=1e-4)

    print("KERNEL_OK")
</pallas_src>

<mosaic_0001>
module attributes {stable_mosaic.version = 11 : i64} {
  func.func @channel_kernel(%arg0: i32, %arg1: memref<16x80xf32, #tpu.memory_space<vmem>>, %arg2: memref<16x8xf32, #tpu.memory_space<vmem>>, %arg3: memref<8x128xf32, #tpu.memory_space<vmem>>, %arg4: memref<16x256xf32, #tpu.memory_space<vmem>>, %arg5: memref<16x256xf32, #tpu.memory_space<vmem>>) attributes {dimension_semantics = [#tpu.dimension_semantics<arbitrary>], iteration_bounds = array<i64: 1>, scalar_prefetch = 0 : i64, scratch_operands = 1 : i64, tpu.core_type = #tpu.core_type<tc>, window_params = [{pipeline_mode = #tpu.pipeline_mode<synchronous>, transform_indices = @transform_0, window_bounds = array<i64: 16, 80>}, {pipeline_mode = #tpu.pipeline_mode<synchronous>, transform_indices = @transform_1, window_bounds = array<i64: 16, 8>}, {pipeline_mode = #tpu.pipeline_mode<synchronous>, transform_indices = @transform_2, window_bounds = array<i64: 8, 128>}, {pipeline_mode = #tpu.pipeline_mode<synchronous>, transform_indices = @transform_3, window_bounds = array<i64: 16, 256>}]} {
    %cst = arith.constant 0.000000e+00 : f32
    %0 = vector.broadcast %cst : f32 to vector<16x256xf32>
    %c0 = arith.constant 0 : index
    %c0_0 = arith.constant 0 : index
    %1 = vector.load %arg5[%c0, %c0_0] : memref<16x256xf32, #tpu.memory_space<vmem>>, vector<16x256xf32>
    tpu.vector_store %arg5[%c0, %c0_0], %0 {strides = array<i32>} : memref<16x256xf32, #tpu.memory_space<vmem>>, vector<16x256xf32>,
    %c0_1 = arith.constant 0 : index
    %c0_2 = arith.constant 0 : index
    %2 = vector.load %arg1[%c0_1, %c0_2] : memref<16x80xf32, #tpu.memory_space<vmem>>, vector<16x80xf32>
    %c0_3 = arith.constant 0 : index
    %c128 = arith.constant 128 : index
    %3 = vector.load %arg5[%c0_3, %c128] : memref<16x256xf32, #tpu.memory_space<vmem>>, vector<16x80xf32>
    tpu.vector_store %arg5[%c0_3, %c128], %2 {strides = array<i32>} : memref<16x256xf32, #tpu.memory_space<vmem>>, vector<16x80xf32>,
    %c0_4 = arith.constant 0 : index
    %c0_5 = arith.constant 0 : index
    %4 = vector.load %arg5[%c0_4, %c0_5] : memref<16x256xf32, #tpu.memory_space<vmem>>, vector<16x256xf32>
    %c0_6 = arith.constant 0 : index
    %c0_7 = arith.constant 0 : index
    %5 = vector.load %arg2[%c0_6, %c0_7] : memref<16x8xf32, #tpu.memory_space<vmem>>, vector<16x8xf32>
    %6 = vector.extract_strided_slice %5 {offsets = [0, 0], sizes = [8, 8], strides = [1, 1]} : vector<16x8xf32> to vector<8x8xf32>
    %7 = vector.extract_strided_slice %5 {offsets = [8, 0], sizes = [8, 8], strides = [1, 1]} : vector<16x8xf32> to vector<8x8xf32>
    %cst_8 = arith.constant 0.000000e+00 : f32
    %8 = vector.broadcast %cst_8 : f32 to vector<8x128xf32>
    %cst_9 = arith.constant 0.000000e+00 : f32
    %9 = vector.broadcast %cst_9 : f32 to vector<8x128xf32>
    %10 = vector.extract_strided_slice %4 {offsets = [0, 128], sizes = [16, 128], strides = [1, 1]} : vector<16x256xf32> to vector<16x128xf32>
    %11 = vector.extract_strided_slice %10 {offsets = [0, 0], sizes = [8, 128], strides = [1, 1]} : vector<16x128xf32> to vector<8x128xf32>
    %12 = vector.extract_strided_slice %10 {offsets = [8, 0], sizes = [8, 128], strides = [1, 1]} : vector<16x128xf32> to vector<8x128xf32>
    %13 = vector.extract_strided_slice %6 {offsets = [0, 0], sizes = [8, 1], strides = [1, 1]} : vector<8x8xf32> to vector<8x1xf32>
    %14 = vector.extract_strided_slice %7 {offsets = [0, 0], sizes = [8, 1], strides = [1, 1]} : vector<8x8xf32> to vector<8x1xf32>
    %15 = vector.broadcast %13 : vector<8x1xf32> to vector<8x128xf32>
    %16 = arith.mulf %15, %11 : vector<8x128xf32>
    %17 = arith.addf %8, %16 : vector<8x128xf32>
    %18 = vector.broadcast %14 : vector<8x1xf32> to vector<8x128xf32>
    %19 = arith.mulf %18, %12 : vector<8x128xf32>
    %20 = arith.subf %17, %19 : vector<8x128xf32>
    %21 = vector.broadcast %13 : vector<8x1xf32> to vector<8x128xf32>
    %22 = arith.mulf %21, %12 : vector<8x128xf32>
    %23 = arith.addf %9, %22 : vector<8x128xf32>
    %24 = vector.broadcast %14 : vector<8x1xf32> to vector<8x128xf32>
    %25 = arith.mulf %24, %11 : vector<8x128xf32>
    %26 = arith.addf %23, %25 : vector<8x128xf32>
    %27 = vector.extract_strided_slice %4 {offsets = [0, 127], sizes = [16, 128], strides = [1, 1]} : vector<16x256xf32> to vector<16x128xf32>
    %28 = vector.extract_strided_slice %27 {offsets = [0, 0], sizes = [8, 128], strides = [1, 1]} : vector<16x128xf32> to vector<8x128xf32>
    %29 = vector.extract_strided_slice %27 {offsets = [8, 0], sizes = [8, 128], strides = [1, 1]} : vector<16x128xf32> to vector<8x128xf32>
    %30 = vector.extract_strided_slice %6 {offsets = [0, 1], sizes = [8, 1], strides = [1, 1]} : vector<8x8xf32> to vector<8x1xf32>
    %31 = vector.extract_strided_slice %7 {offsets = [0, 1], sizes = [8, 1], strides = [1, 1]} : vector<8x8xf32> to vector<8x1xf32>
    %32 = vector.broadcast %30 : vector<8x1xf32> to vector<8x128xf32>
    %33 = arith.mulf %32, %28 : vector<8x128xf32>
    %34 = arith.addf %20, %33 : vector<8x128xf32>
    %35 = vector.broadcast %31 : vector<8x1xf32> to vector<8x128xf32>
    %36 = arith.mulf %35, %29 : vector<8x128xf32>
    %37 = arith.subf %34, %36 : vector<8x128xf32>
    %38 = vector.broadcast %30 : vector<8x1xf32> to vector<8x128xf32>
    %39 = arith.mulf %38, %29 : vector<8x128xf32>
    %40 = arith.addf %26, %39 : vector<8x128xf32>
    %41 = vector.broadcast %31 : vector<8x1xf32> to vector<8x128xf32>
    %42 = arith.mulf %41, %28 : vector<8x128xf32>
    %43 = arith.addf %40, %42 : vector<8x128xf32>
    %44 = vector.extract_strided_slice %4 {offsets = [0, 126], sizes = [16, 128], strides = [1, 1]} : vector<16x256xf32> to vector<16x128xf32>
    %45 = vector.extract_strided_slice %44 {offsets = [0, 0], sizes = [8, 128], strides = [1, 1]} : vector<16x128xf32> to vector<8x128xf32>
    %46 = vector.extract_strided_slice %44 {offsets = [8, 0], sizes = [8, 128], strides = [1, 1]} : vector<16x128xf32> to vector<8x128xf32>
    %47 = vector.extract_strided_slice %6 {offsets = [0, 2], sizes = [8, 1], strides = [1, 1]} : vector<8x8xf32> to vector<8x1xf32>
    %48 = vector.extract_strided_slice %7 {offsets = [0, 2], sizes = [8, 1], strides = [1, 1]} : vector<8x8xf32> to vector<8x1xf32>
    %49 = vector.broadcast %47 : vector<8x1xf32> to vector<8x128xf32>
    %50 = arith.mulf %49, %45 : vector<8x128xf32>
    %51 = arith.addf %37, %50 : vector<8x128xf32>
    %52 = vector.broadcast %48 : vector<8x1xf32> to vector<8x128xf32>
    %53 = arith.mulf %52, %46 : vector<8x128xf32>
    %54 = arith.subf %51, %53 : vector<8x128xf32>
    %55 = vector.broadcast %47 : vector<8x1xf32> to vector<8x128xf32>
    %56 = arith.mulf %55, %46 : vector<8x128xf32>
    %57 = arith.addf %43, %56 : vector<8x128xf32>
    %58 = vector.broadcast %48 : vector<8x1xf32> to vector<8x128xf32>
    %59 = arith.mulf %58, %45 : vector<8x128xf32>
    %60 = arith.addf %57, %59 : vector<8x128xf32>
    %61 = vector.extract_strided_slice %4 {offsets = [0, 125], sizes = [16, 128], strides = [1, 1]} : vector<16x256xf32> to vector<16x128xf32>
    %62 = vector.extract_strided_slice %61 {offsets = [0, 0], sizes = [8, 128], strides = [1, 1]} : vector<16x128xf32> to vector<8x128xf32>
    %63 = vector.extract_strided_slice %61 {offsets = [8, 0], sizes = [8, 128], strides = [1, 1]} : vector<16x128xf32> to vector<8x128xf32>
    %64 = vector.extract_strided_slice %6 {offsets = [0, 3], sizes = [8, 1], strides = [1, 1]} : vector<8x8xf32> to vector<8x1xf32>
    %65 = vector.extract_strided_slice %7 {offsets = [0, 3], sizes = [8, 1], strides = [1, 1]} : vector<8x8xf32> to vector<8x1xf32>
    %66 = vector.broadcast %64 : vector<8x1xf32> to vector<8x128xf32>
    %67 = arith.mulf %66, %62 : vector<8x128xf32>
    %68 = arith.addf %54, %67 : vector<8x128xf32>
    %69 = vector.broadcast %65 : vector<8x1xf32> to vector<8x128xf32>
    %70 = arith.mulf %69, %63 : vector<8x128xf32>
    %71 = arith.subf %68, %70 : vector<8x128xf32>
    %72 = vector.broadcast %64 : vector<8x1xf32> to vector<8x128xf32>
    %73 = arith.mulf %72, %63 : vector<8x128xf32>
    %74 = arith.addf %60, %73 : vector<8x128xf32>
    %75 = vector.broadcast %65 : vector<8x1xf32> to vector<8x128xf32>
    %76 = arith.mulf %75, %62 : vector<8x128xf32>
    %77 = arith.addf %74, %76 : vector<8x128xf32>
    %78 = vector.extract_strided_slice %4 {offsets = [0, 124], sizes = [16, 128], strides = [1, 1]} : vector<16x256xf32> to vector<16x128xf32>
    %79 = vector.extract_strided_slice %78 {offsets = [0, 0], sizes = [8, 128], strides = [1, 1]} : vector<16x128xf32> to vector<8x128xf32>
    %80 = vector.extract_strided_slice %78 {offsets = [8, 0], sizes = [8, 128], strides = [1, 1]} : vector<16x128xf32> to vector<8x128xf32>
    %81 = vector.extract_strided_slice %6 {offsets = [0, 4], sizes = [8, 1], strides = [1, 1]} : vector<8x8xf32> to vector<8x1xf32>
    %82 = vector.extract_strided_slice %7 {offsets = [0, 4], sizes = [8, 1], strides = [1, 1]} : vector<8x8xf32> to vector<8x1xf32>
    %83 = vector.broadcast %81 : vector<8x1xf32> to vector<8x128xf32>
    %84 = arith.mulf %83, %79 : vector<8x128xf32>
    %85 = arith.addf %71, %84 : vector<8x128xf32>
    %86 = vector.broadcast %82 : vector<8x1xf32> to vector<8x128xf32>
    %87 = arith.mulf %86, %80 : vector<8x128xf32>
    %88 = arith.subf %85, %87 : vector<8x128xf32>
    %89 = vector.broadcast %81 : vector<8x1xf32> to vector<8x128xf32>
    %90 = arith.mulf %89, %80 : vector<8x128xf32>
    %91 = arith.addf %77, %90 : vector<8x128xf32>
    %92 = vector.broadcast %82 : vector<8x1xf32> to vector<8x128xf32>
    %93 = arith.mulf %92, %79 : vector<8x128xf32>
    %94 = arith.addf %91, %93 : vector<8x128xf32>
    %95 = vector.extract_strided_slice %4 {offsets = [0, 123], sizes = [16, 128], strides = [1, 1]} : vector<16x256xf32> to vector<16x128xf32>
    %96 = vector.extract_strided_slice %95 {offsets = [0, 0], sizes = [8, 128], strides = [1, 1]} : vector<16x128xf32> to vector<8x128xf32>
    %97 = vector.extract_strided_slice %95 {offsets = [8, 0], sizes = [8, 128], strides = [1, 1]} : vector<16x128xf32> to vector<8x128xf32>
    %98 = vector.extract_strided_slice %6 {offsets = [0, 5], sizes = [8, 1], strides = [1, 1]} : vector<8x8xf32> to vector<8x1xf32>
    %99 = vector.extract_strided_slice %7 {offsets = [0, 5], sizes = [8, 1], strides = [1, 1]} : vector<8x8xf32> to vector<8x1xf32>
    %100 = vector.broadcast %98 : vector<8x1xf32> to vector<8x128xf32>
    %101 = arith.mulf %100, %96 : vector<8x128xf32>
    %102 = arith.addf %88, %101 : vector<8x128xf32>
    %103 = vector.broadcast %99 : vector<8x1xf32> to vector<8x128xf32>
    %104 = arith.mulf %103, %97 : vector<8x128xf32>
    %105 = arith.subf %102, %104 : vector<8x128xf32>
    %106 = vector.broadcast %98 : vector<8x1xf32> to vector<8x128xf32>
    %107 = arith.mulf %106, %97 : vector<8x128xf32>
    %108 = arith.addf %94, %107 : vector<8x128xf32>
    %109 = vector.broadcast %99 : vector<8x1xf32> to vector<8x128xf32>
    %110 = arith.mulf %109, %96 : vector<8x128xf32>
    %111 = arith.addf %108, %110 : vector<8x128xf32>
    %112 = vector.extract_strided_slice %4 {offsets = [0, 122], sizes = [16, 128], strides = [1, 1]} : vector<16x256xf32> to vector<16x128xf32>
    %113 = vector.extract_strided_slice %112 {offsets = [0, 0], sizes = [8, 128], strides = [1, 1]} : vector<16x128xf32> to vector<8x128xf32>
    %114 = vector.extract_strided_slice %112 {offsets = [8, 0], sizes = [8, 128], strides = [1, 1]} : vector<16x128xf32> to vector<8x128xf32>
    %115 = vector.extract_strided_slice %6 {offsets = [0, 6], sizes = [8, 1], strides = [1, 1]} : vector<8x8xf32> to vector<8x1xf32>
    %116 = vector.extract_strided_slice %7 {offsets = [0, 6], sizes = [8, 1], strides = [1, 1]} : vector<8x8xf32> to vector<8x1xf32>
    %117 = vector.broadcast %115 : vector<8x1xf32> to vector<8x128xf32>
    %118 = arith.mulf %117, %113 : vector<8x128xf32>
    %119 = arith.addf %105, %118 : vector<8x128xf32>
    %120 = vector.broadcast %116 : vector<8x1xf32> to vector<8x128xf32>
    %121 = arith.mulf %120, %114 : vector<8x128xf32>
    %122 = arith.subf %119, %121 : vector<8x128xf32>
    %123 = vector.broadcast %115 : vector<8x1xf32> to vector<8x128xf32>
    %124 = arith.mulf %123, %114 : vector<8x128xf32>
    %125 = arith.addf %111, %124 : vector<8x128xf32>
    %126 = vector.broadcast %116 : vector<8x1xf32> to vector<8x128xf32>
    %127 = arith.mulf %126, %113 : vector<8x128xf32>
    %128 = arith.addf %125, %127 : vector<8x128xf32>
    %129 = vector.extract_strided_slice %4 {offsets = [0, 121], sizes = [16, 128], strides = [1, 1]} : vector<16x256xf32> to vector<16x128xf32>
    %130 = vector.extract_strided_slice %129 {offsets = [0, 0], sizes = [8, 128], strides = [1, 1]} : vector<16x128xf32> to vector<8x128xf32>
    %131 = vector.extract_strided_slice %129 {offsets = [8, 0], sizes = [8, 128], strides = [1, 1]} : vector<16x128xf32> to vector<8x128xf32>
    %132 = vector.extract_strided_slice %6 {offsets = [0, 7], sizes = [8, 1], strides = [1, 1]} : vector<8x8xf32> to vector<8x1xf32>
    %133 = vector.extract_strided_slice %7 {offsets = [0, 7], sizes = [8, 1], strides = [1, 1]} : vector<8x8xf32> to vector<8x1xf32>
    %134 = vector.broadcast %132 : vector<8x1xf32> to vector<8x128xf32>
    %135 = arith.mulf %134, %130 : vector<8x128xf32>
    %136 = arith.addf %122, %135 : vector<8x128xf32>
    %137 = vector.broadcast %133 : vector<8x1xf32> to vector<8x128xf32>
    %138 = arith.mulf %137, %131 : vector<8x128xf32>
    %139 = arith.subf %136, %138 : vector<8x128xf32>
    %140 = vector.broadcast %132 : vector<8x1xf32> to vector<8x128xf32>
    %141 = arith.mulf %140, %131 : vector<8x128xf32>
    %142 = arith.addf %128, %141 : vector<8x128xf32>
    %143 = vector.broadcast %133 : vector<8x1xf32> to vector<8x128xf32>
    %144 = arith.mulf %143, %130 : vector<8x128xf32>
    %145 = arith.addf %142, %144 : vector<8x128xf32>
    %c0_10 = arith.constant 0 : index
    %c0_11 = arith.constant 0 : index
    %146 = vector.load %arg4[%c0_10, %c0_11] : memref<16x256xf32, #tpu.memory_space<vmem>>, vector<8x128xf32>
    tpu.vector_store %arg4[%c0_10, %c0_11], %139 {strides = array<i32>} : memref<16x256xf32, #tpu.memory_space<vmem>>, vector<8x128xf32>,
    %c8 = arith.constant 8 : index
    %c0_12 = arith.constant 0 : index
    %147 = vector.load %arg4[%c8, %c0_12] : memref<16x256xf32, #tpu.memory_space<vmem>>, vector<8x128xf32>
    tpu.vector_store %arg4[%c8, %c0_12], %145 {strides = array<i32>} : memref<16x256xf32, #tpu.memory_space<vmem>>, vector<8x128xf32>,
    %c0_13 = arith.constant 0 : index
    %c0_14 = arith.constant 0 : index
    %148 = vector.load %arg3[%c0_13, %c0_14] : memref<8x128xf32, #tpu.memory_space<vmem>>, vector<8x128xf32>
    %cst_15 = arith.constant dense<0.000000e+00> : vector<16x128xf32>
    %149 = tpu.matmul %5, %148, %cst_15 {dimension_numbers = #tpu.dot_dimension_numbers<[1], [0], [0], [1], [0, 0, 1, 1], [], []>} : vector<16x8xf32>, vector<8x128xf32>, vector<16x128xf32> -> vector<16x128xf32>
    %150 = vector.extract_strided_slice %149 {offsets = [0, 0], sizes = [16, 64], strides = [1, 1]} : vector<16x128xf32> to vector<16x64xf32>
    %151 = vector.extract_strided_slice %149 {offsets = [0, 64], sizes = [16, 64], strides = [1, 1]} : vector<16x128xf32> to vector<16x64xf32>
    %152 = vector.extract_strided_slice %150 {offsets = [0, 0], sizes = [8, 64], strides = [1, 1]} : vector<16x64xf32> to vector<8x64xf32>
    %153 = vector.extract_strided_slice %151 {offsets = [8, 0], sizes = [8, 64], strides = [1, 1]} : vector<16x64xf32> to vector<8x64xf32>
    %154 = arith.subf %152, %153 : vector<8x64xf32>
    %155 = vector.extract_strided_slice %151 {offsets = [0, 0], sizes = [8, 64], strides = [1, 1]} : vector<16x64xf32> to vector<8x64xf32>
    %156 = vector.extract_strided_slice %150 {offsets = [8, 0], sizes = [8, 64], strides = [1, 1]} : vector<16x64xf32> to vector<8x64xf32>
    %157 = arith.addf %155, %156 : vector<8x64xf32>
    %c0_16 = arith.constant 0 : index
    %c128_17 = arith.constant 128 : index
    %158 = vector.load %arg4[%c0_16, %c128_17] : memref<16x256xf32, #tpu.memory_space<vmem>>, vector<8x64xf32>
    tpu.vector_store %arg4[%c0_16, %c128_17], %154 {strides = array<i32>} : memref<16x256xf32, #tpu.memory_space<vmem>>, vector<8x64xf32>,
    %c8_18 = arith.constant 8 : index
    %c128_19 = arith.constant 128 : index
    %159 = vector.load %arg4[%c8_18, %c128_19] : memref<16x256xf32, #tpu.memory_space<vmem>>, vector<8x64xf32>
    tpu.vector_store %arg4[%c8_18, %c128_19], %157 {strides = array<i32>} : memref<16x256xf32, #tpu.memory_space<vmem>>, vector<8x64xf32>,
    %cst_20 = arith.constant 0.000000e+00 : f32
    %160 = vector.broadcast %cst_20 : f32 to vector<16x64xf32>
    %c0_21 = arith.constant 0 : index
    %c192 = arith.constant 192 : index
    %161 = vector.load %arg4[%c0_21, %c192] : memref<16x256xf32, #tpu.memory_space<vmem>>, vector<16x64xf32>
    tpu.vector_store %arg4[%c0_21, %c192], %160 {strides = array<i32>} : memref<16x256xf32, #tpu.memory_space<vmem>>, vector<16x64xf32>,
    return
  }
  func.func @transform_0(%arg0: i32) -> (i32, i32) {
    %c0_i32 = arith.constant 0 : i32
    %c0_i32_0 = arith.constant 0 : i32
    %c0_i32_1 = arith.constant 0 : i32
    return %c0_i32, %c0_i32_0 : i32, i32
  }
  func.func @transform_1(%arg0: i32) -> (i32, i32) {
    %c0_i32 = arith.constant 0 : i32
    %c0_i32_0 = arith.constant 0 : i32
    %c0_i32_1 = arith.constant 0 : i32
    return %c0_i32, %c0_i32_0 : i32, i32
  }
  func.func @transform_2(%arg0: i32) -> (i32, i32) {
    %c0_i32 = arith.constant 0 : i32
    %c0_i32_0 = arith.constant 0 : i32
    %c0_i32_1 = arith.constant 0 : i32
    return %c0_i32, %c0_i32_0 : i32, i32
  }
  func.func @transform_3(%arg0: i32) -> (i32, i32) {
    %c0_i32 = arith.constant 0 : i32
    %c0_i32_0 = arith.constant 0 : i32
    %c0_i32_1 = arith.constant 0 : i32
    return %c0_i32, %c0_i32_0 : i32, i32
  }
}

</mosaic_0001>

<llo_original>
// kernel: channel_forward.1
$region0: #{channel_forward.1}
  #allocation0 [shape = 'u32[]', space=smem, size = 0x4, offset = 0x4, fixed_abs, tag = 'smem constant byte address 0x4 - core index']
  #allocation1 [shape = 'u32[144,128]{1,0:T(1,128)}', space=vmem, size = 0x12000, scoped, tag = 'internal scratch']
  #allocation2 [shape = 'f32[16,256]{1,0:T(8,128)}', space=vmem, size = 0x4000, scoped, tag = 'scratch operand']
  %s0 = inlined_call_operand.vmem [shape: f32[16,80], index: 0, kind: input, shape index: {}]
  %s1 = inlined_call_operand.vmem [shape: f32[16,8], index: 1, kind: input, shape index: {}]
  %s2 = inlined_call_operand.vmem [shape: f32[8,128], index: 2, kind: input, shape index: {}]
  %s3 = inlined_call_operand.vmem [shape: f32[16,256], index: 3, kind: output, shape index: {}]
  %s4 = sld [smem:[#allocation0]]
  $region22: #{channel_forward.1} parent=0
    _
  %s6 = ssub.s32 1, %s4
  %s7 = scalar_select 0, %s6, %s4
  // Predicated region
  $region2: #{channel_forward.1} parent=0 // pred_check
    _
  $region3: #{channel_forward.1} parent=0 // pred_check_branch
    %9 = sbr.rel (0) target = $region5
  $region4: #{channel_forward.1} parent=0 // pred_region
    _
  $region5: #{channel_forward.1} parent=0 // pred_fallthru
    _
  // Predicated region
  $region6: #{channel_forward.1} parent=0 // pred_check
    _
  $region7: #{channel_forward.1} parent=0 // pred_check_branch
    %11 = sbr.rel (0) target = $region9
  $region8: #{channel_forward.1} parent=0 // pred_region
    _
  $region9: #{channel_forward.1} parent=0 // pred_fallthru
    _
  // Predicated region
  $region10: #{channel_forward.1} parent=0 // pred_check
    _
  $region11: #{channel_forward.1} parent=0 // pred_check_branch
    %13 = sbr.rel (0) target = $region13
  $region12: #{channel_forward.1} parent=0 // pred_region
    _
  $region13: #{channel_forward.1} parent=0 // pred_fallthru
    _
  %14 = vst [vmem:[#allocation2] sm:$0xff] 0.0
  %15 = vst [vmem:[#allocation2 + $0x8] sm:$0xff] 0.0
  %16 = vst [vmem:[#allocation2 + $0x10] sm:$0xff] 0.0
  %17 = vst [vmem:[#allocation2 + $0x18] sm:$0xff] 0.0
  %v18 = vld [vmem:[%s0] sm:$0xff]
  %v19 = vld [vmem:[%s0 + $0x8] sm:$0xff]
  %vm20 = vcmask 654336
  %21 = vst.msk [vmem:[#allocation2 + $0x8] sm:$0xff] %vm20, %v18
  %22 = vst.msk [vmem:[#allocation2 + $0x18] sm:$0xff] %vm20, %v19
  %v23 = vld [vmem:[#allocation2] sm:$0xff]
  %v24 = vld [vmem:[#allocation2 + $0x8] sm:$0xff]
  %v25 = vld [vmem:[#allocation2 + $0x10] sm:$0xff]
  %v26 = vld [vmem:[#allocation2 + $0x18] sm:$0xff]
  %v27 = vld [vmem:[%s1] sm:$0xff]
  %v28 = vld [vmem:[%s1 + $0x8] sm:$0xff]
  %30 = vset.pattern.permute.xlu0 0
  %31 = vperm.xlu0 %30, %v27
  %v32 = vpop.permute.xlu0 %31
  %v34 = vmul.f32 %v32, %v24
  %v35 = vadd.f32 %v34, 0.0
  %37 = vset.pattern.permute.xlu0 0
  %38 = vperm.xlu0 %37, %v28
  %v39 = vpop.permute.xlu0 %38
  %v41 = vmul.f32 %v39, %v26
  %v42 = vsub.f32 %v35, %v41
  %v43 = vmul.f32 %v32, %v26
  %v44 = vadd.f32 %v43, 0.0
  %v45 = vmul.f32 %v39, %v24
  %v46 = vadd.f32 %v44, %v45
  %47 = vset.pattern.permute.xlu0 1
  %48 = vperm.xlu0 %47, %v27
  %v49 = vpop.permute.xlu0 %48
  %v51 = vmul.f32 %v49, %v23
  %v52 = vmul.f32 %v49, %v24
  %55 = vrot.lane.b32.xlu0 %v51, 1
  %v56 = vpop.permute.xlu0 %55
  %57 = vrot.lane.b32.xlu0 %v52, 1
  %v58 = vpop.permute.xlu0 %57
  %vm59 = vcmask 7168
  %v60 = vsel %vm59, %v56, %v58
  %v62 = vadd.f32 %v42, %v60
  %63 = vset.pattern.permute.xlu0 1
  %64 = vperm.xlu0 %63, %v28
  %v65 = vpop.permute.xlu0 %64
  %v67 = vmul.f32 %v65, %v25
  %v68 = vmul.f32 %v65, %v26
  %71 = vrot.lane.b32.xlu0 %v67, 1
  %v72 = vpop.permute.xlu0 %71
  %73 = vrot.lane.b32.xlu0 %v68, 1
  %v74 = vpop.permute.xlu0 %73
  %v75 = vsel %vm59, %v72, %v74
  %v77 = vsub.f32 %v62, %v75
  %v78 = vmul.f32 %v49, %v25
  %v79 = vmul.f32 %v49, %v26
  %82 = vrot.lane.b32.xlu0 %v78, 1
  %v83 = vpop.permute.xlu0 %82
  %84 = vrot.lane.b32.xlu0 %v79, 1
  %v85 = vpop.permute.xlu0 %84
  %v86 = vsel %vm59, %v83, %v85
  %v88 = vadd.f32 %v46, %v86
  %v89 = vmul.f32 %v65, %v23
  %v90 = vmul.f32 %v65, %v24
  %93 = vrot.lane.b32.xlu0 %v89, 1
  %v94 = vpop.permute.xlu0 %93
  %95 = vrot.lane.b32.xlu0 %v90, 1
  %v96 = vpop.permute.xlu0 %95
  %v97 = vsel %vm59, %v94, %v96
  %v99 = vadd.f32 %v88, %v97
  %100 = vset.pattern.permute.xlu0 2
  %101 = vperm.xlu0 %100, %v27
  %v102 = vpop.permute.xlu0 %101
  %v104 = vmul.f32 %v102, %v23
  %v105 = vmul.f32 %v102, %v24
  %108 = vrot.lane.b32.xlu0 %v104, 2
  %v109 = vpop.permute.xlu0 %108
  %110 = vrot.lane.b32.xlu0 %v105, 2
  %v111 = vpop.permute.xlu0 %110
  %vm112 = vcmask 15360
  %v113 = vsel %vm112, %v109, %v111
  %v115 = vadd.f32 %v77, %v113
  %116 = vset.pattern.permute.xlu0 2
  %117 = vperm.xlu0 %116, %v28
  %v118 = vpop.permute.xlu0 %117
  %v120 = vmul.f32 %v118, %v25
  %v121 = vmul.f32 %v118, %v26
  %124 = vrot.lane.b32.xlu0 %v120, 2
  %v125 = vpop.permute.xlu0 %124
  %126 = vrot.lane.b32.xlu0 %v121, 2
  %v127 = vpop.permute.xlu0 %126
  %v128 = vsel %vm112, %v125, %v127
  %v130 = vsub.f32 %v115, %v128
  %v131 = vmul.f32 %v102, %v25
  %v132 = vmul.f32 %v102, %v26
  %135 = vrot.lane.b32.xlu0 %v131, 2
  %v136 = vpop.permute.xlu0 %135
  %137 = vrot.lane.b32.xlu0 %v132, 2
  %v138 = vpop.permute.xlu0 %137
  %v139 = vsel %vm112, %v136, %v138
  %v141 = vadd.f32 %v99, %v139
  %v142 = vmul.f32 %v118, %v23
  %v143 = vmul.f32 %v118, %v24
  %146 = vrot.lane.b32.xlu0 %v142, 2
  %v147 = vpop.permute.xlu0 %146
  %148 = vrot.lane.b32.xlu0 %v143, 2
  %v149 = vpop.permute.xlu0 %148
  %v150 = vsel %vm112, %v147, %v149
  %v152 = vadd.f32 %v141, %v150
  %153 = vset.pattern.permute.xlu0 3
  %154 = vperm.xlu0 %153, %v27
  %v155 = vpop.permute.xlu0 %154
  %v157 = vmul.f32 %v155, %v23
  %v158 = vmul.f32 %v155, %v24
  %161 = vrot.lane.b32.xlu0 %v157, 3
  %v162 = vpop.permute.xlu0 %161
  %163 = vrot.lane.b32.xlu0 %v158, 3
  %v164 = vpop.permute.xlu0 %163
  %vm165 = vcmask 23552
  %v166 = vsel %vm165, %v162, %v164
  %v168 = vadd.f32 %v130, %v166
  %169 = vset.pattern.permute.xlu0 3
  %170 = vperm.xlu0 %169, %v28
  %v171 = vpop.permute.xlu0 %170
  %v173 = vmul.f32 %v171, %v25
  %v174 = vmul.f32 %v171, %v26
  %177 = vrot.lane.b32.xlu0 %v173, 3
  %v178 = vpop.permute.xlu0 %177
  %179 = vrot.lane.b32.xlu0 %v174, 3
  %v180 = vpop.permute.xlu0 %179
  %v181 = vsel %vm165, %v178, %v180
  %v183 = vsub.f32 %v168, %v181
  %v184 = vmul.f32 %v155, %v25
  %v185 = vmul.f32 %v155, %v26
  %188 = vrot.lane.b32.xlu0 %v184, 3
  %v189 = vpop.permute.xlu0 %188
  %190 = vrot.lane.b32.xlu0 %v185, 3
  %v191 = vpop.permute.xlu0 %190
  %v192 = vsel %vm165, %v189, %v191
  %v194 = vadd.f32 %v152, %v192
  %v195 = vmul.f32 %v171, %v23
  %v196 = vmul.f32 %v171, %v24
  %199 = vrot.lane.b32.xlu0 %v195, 3
  %v200 = vpop.permute.xlu0 %199
  %201 = vrot.lane.b32.xlu0 %v196, 3
  %v202 = vpop.permute.xlu0 %201
  %v203 = vsel %vm165, %v200, %v202
  %v205 = vadd.f32 %v194, %v203
  %206 = vset.pattern.permute.xlu0 4
  %207 = vperm.xlu0 %206, %v27
  %v208 = vpop.permute.xlu0 %207
  %v210 = vmul.f32 %v208, %v23
  %v211 = vmul.f32 %v208, %v24
  %214 = vrot.lane.b32.xlu0 %v210, 4
  %v215 = vpop.permute.xlu0 %214
  %216 = vrot.lane.b32.xlu0 %v211, 4
  %v217 = vpop.permute.xlu0 %216
  %vm218 = vcmask 31744
  %v219 = vsel %vm218, %v215, %v217
  %v221 = vadd.f32 %v183, %v219
  %222 = vset.pattern.permute.xlu0 4
  %223 = vperm.xlu0 %222, %v28
  %v224 = vpop.permute.xlu0 %223
  %v226 = vmul.f32 %v224, %v25
  %v227 = vmul.f32 %v224, %v26
  %230 = vrot.lane.b32.xlu0 %v226, 4
  %v231 = vpop.permute.xlu0 %230
  %232 = vrot.lane.b32.xlu0 %v227, 4
  %v233 = vpop.permute.xlu0 %232
  %v234 = vsel %vm218, %v231, %v233
  %v236 = vsub.f32 %v221, %v234
  %v237 = vmul.f32 %v208, %v25
  %v238 = vmul.f32 %v208, %v26
  %241 = vrot.lane.b32.xlu0 %v237, 4
  %v242 = vpop.permute.xlu0 %241
  %243 = vrot.lane.b32.xlu0 %v238, 4
  %v244 = vpop.permute.xlu0 %243
  %v245 = vsel %vm218, %v242, %v244
  %v247 = vadd.f32 %v205, %v245
  %v248 = vmul.f32 %v224, %v23
  %v249 = vmul.f32 %v224, %v24
  %252 = vrot.lane.b32.xlu0 %v248, 4
  %v253 = vpop.permute.xlu0 %252
  %254 = vrot.lane.b32.xlu0 %v249, 4
  %v255 = vpop.permute.xlu0 %254
  %v256 = vsel %vm218, %v253, %v255
  %v258 = vadd.f32 %v247, %v256
  %259 = vset.pattern.permute.xlu0 5
  %260 = vperm.xlu0 %259, %v27
  %v261 = vpop.permute.xlu0 %260
  %v263 = vmul.f32 %v261, %v23
  %v264 = vmul.f32 %v261, %v24
  %267 = vrot.lane.b32.xlu0 %v263, 5
  %v268 = vpop.permute.xlu0 %267
  %269 = vrot.lane.b32.xlu0 %v264, 5
  %v270 = vpop.permute.xlu0 %269
  %vm271 = vcmask 39936
  %v272 = vsel %vm271, %v268, %v270
  %v274 = vadd.f32 %v236, %v272
  %275 = vset.pattern.permute.xlu0 5
  %276 = vperm.xlu0 %275, %v28
  %v277 = vpop.permute.xlu0 %276
  %v279 = vmul.f32 %v277, %v25
  %v280 = vmul.f32 %v277, %v26
  %283 = vrot.lane.b32.xlu0 %v279, 5
  %v284 = vpop.permute.xlu0 %283
  %285 = vrot.lane.b32.xlu0 %v280, 5
  %v286 = vpop.permute.xlu0 %285
  %v287 = vsel %vm271, %v284, %v286
  %v289 = vsub.f32 %v274, %v287
  %v290 = vmul.f32 %v261, %v25
  %v291 = vmul.f32 %v261, %v26
  %294 = vrot.lane.b32.xlu0 %v290, 5
  %v295 = vpop.permute.xlu0 %294
  %296 = vrot.lane.b32.xlu0 %v291, 5
  %v297 = vpop.permute.xlu0 %296
  %v298 = vsel %vm271, %v295, %v297
  %v300 = vadd.f32 %v258, %v298
  %v301 = vmul.f32 %v277, %v23
  %v302 = vmul.f32 %v277, %v24
  %305 = vrot.lane.b32.xlu0 %v301, 5
  %v306 = vpop.permute.xlu0 %305
  %307 = vrot.lane.b32.xlu0 %v302, 5
  %v308 = vpop.permute.xlu0 %307
  %v309 = vsel %vm271, %v306, %v308
  %v311 = vadd.f32 %v300, %v309
  %312 = vset.pattern.permute.xlu0 6
  %313 = vperm.xlu0 %312, %v27
  %v314 = vpop.permute.xlu0 %313
  %v316 = vmul.f32 %v314, %v23
  %v317 = vmul.f32 %v314, %v24
  %320 = vrot.lane.b32.xlu0 %v316, 6
  %v321 = vpop.permute.xlu0 %320
  %322 = vrot.lane.b32.xlu0 %v317, 6
  %v323 = vpop.permute.xlu0 %322
  %vm324 = vcmask 48128
  %v325 = vsel %vm324, %v321, %v323
  %v327 = vadd.f32 %v289, %v325
  %328 = vset.pattern.permute.xlu0 6
  %329 = vperm.xlu0 %328, %v28
  %v330 = vpop.permute.xlu0 %329
  %v332 = vmul.f32 %v330, %v25
  %v333 = vmul.f32 %v330, %v26
  %336 = vrot.lane.b32.xlu0 %v332, 6
  %v337 = vpop.permute.xlu0 %336
  %338 = vrot.lane.b32.xlu0 %v333, 6
  %v339 = vpop.permute.xlu0 %338
  %v340 = vsel %vm324, %v337, %v339
  %v342 = vsub.f32 %v327, %v340
  %v343 = vmul.f32 %v314, %v25
  %v344 = vmul.f32 %v314, %v26
  %347 = vrot.lane.b32.xlu0 %v343, 6
  %v348 = vpop.permute.xlu0 %347
  %349 = vrot.lane.b32.xlu0 %v344, 6
  %v350 = vpop.permute.xlu0 %349
  %v351 = vsel %vm324, %v348, %v350
  %v353 = vadd.f32 %v311, %v351
  %v354 = vmul.f32 %v330, %v23
  %v355 = vmul.f32 %v330, %v24
  %358 = vrot.lane.b32.xlu0 %v354, 6
  %v359 = vpop.permute.xlu0 %358
  %360 = vrot.lane.b32.xlu0 %v355, 6
  %v361 = vpop.permute.xlu0 %360
  %v362 = vsel %vm324, %v359, %v361
  %v364 = vadd.f32 %v353, %v362
  %365 = vset.pattern.permute.xlu0 7
  %366 = vperm.xlu0 %365, %v27
  %v367 = vpop.permute.xlu0 %366
  %v369 = vmul.f32 %v367, %v23
  %v370 = vmul.f32 %v367, %v24
  %373 = vrot.lane.b32.xlu0 %v369, 7
  %v374 = vpop.permute.xlu0 %373
  %375 = vrot.lane.b32.xlu0 %v370, 7
  %v376 = vpop.permute.xlu0 %375
  %vm377 = vcmask 56320
  %v378 = vsel %vm377, %v374, %v376
  %v380 = vadd.f32 %v342, %v378
  %381 = vset.pattern.permute.xlu0 7
  %382 = vperm.xlu0 %381, %v28
  %v383 = vpop.permute.xlu0 %382
  %v385 = vmul.f32 %v383, %v25
  %v386 = vmul.f32 %v383, %v26
  %389 = vrot.lane.b32.xlu0 %v385, 7
  %v390 = vpop.permute.xlu0 %389
  %391 = vrot.lane.b32.xlu0 %v386, 7
  %v392 = vpop.permute.xlu0 %391
  %v393 = vsel %vm377, %v390, %v392
  %v395 = vsub.f32 %v380, %v393
  %v396 = vmul.f32 %v367, %v25
  %v397 = vmul.f32 %v367, %v26
  %400 = vrot.lane.b32.xlu0 %v396, 7
  %v401 = vpop.permute.xlu0 %400
  %402 = vrot.lane.b32.xlu0 %v397, 7
  %v403 = vpop.permute.xlu0 %402
  %v404 = vsel %vm377, %v401, %v403
  %v406 = vadd.f32 %v364, %v404
  %v407 = vmul.f32 %v383, %v23
  %v408 = vmul.f32 %v383, %v24
  %411 = vrot.lane.b32.xlu0 %v407, 7
  %v412 = vpop.permute.xlu0 %411
  %413 = vrot.lane.b32.xlu0 %v408, 7
  %v414 = vpop.permute.xlu0 %413
  %v415 = vsel %vm377, %v412, %v414
  %v417 = vadd.f32 %v406, %v415
  %418 = vst [vmem:[%s3] sm:$0xff] %v395
  %419 = vst [vmem:[%s3 + $0x10] sm:$0xff] %v417
  %v420 = vld [vmem:[%s2] sm:$0xff]
  %vm421 = vcmask 64512
  %v422 = vsel %vm421, %v27, 0
  %v424 = vsel %vm421, %v28, 0
  %426 = vmatprep.subr.mxu0 0.0
  %427 = vmatpush1.msra.mxu0 %v420
  %428 = vmatprep.subr.mxu0 0.0
  %429 = vmatpush1.msra.mxu0 0.0
  %430 = vmatprep.subr.mxu0 0.0
  %431 = vmatpush1.msra.mxu0 0.0
  %432 = vmatprep.subr.mxu0 0.0
  %433 = vmatpush1.msra.mxu0 0.0
  %434 = vmatprep.subr.mxu0 0.0
  %435 = vmatpush1.msra.mxu0 0.0
  %436 = vmatprep.subr.mxu0 0.0
  %437 = vmatpush1.msra.mxu0 0.0
  %438 = vmatprep.subr.mxu0 0.0
  %439 = vmatpush1.msra.mxu0 0.0
  %440 = vmatprep.subr.mxu0 0.0
  %441 = vmatpush1.msra.mxu0 0.0
  %442 = vmatprep.subr.mxu0 0.0
  %443 = vmatpush1.msra.mxu0 0.0
  %444 = vmatprep.subr.mxu0 0.0
  %445 = vmatpush1.msra.mxu0 0.0
  %446 = vmatprep.subr.mxu0 0.0
  %447 = vmatpush1.msra.mxu0 0.0
  %448 = vmatprep.subr.mxu0 0.0
  %449 = vmatpush1.msra.mxu0 0.0
  %450 = vmatprep.subr.mxu0 0.0
  %451 = vmatpush1.msra.mxu0 0.0
  %452 = vmatprep.subr.mxu0 0.0
  %453 = vmatpush1.msra.mxu0 0.0
  %454 = vmatprep.subr.mxu0 0.0
  %455 = vmatpush1.msra.mxu0 0.0
  %456 = vmatprep.subr.mxu0 0.0
  %457 = vmatpush1.msra.mxu0 0.0
  %458 = vmatprep.subr.mxu0 0.0
  %459 = vmatpush1.msra.mxu0 0.0
  %460 = vmatprep.subr.mxu0 0.0
  %461 = vmatpush1.msra.mxu0 0.0
  %462 = vmatprep.subr.mxu0 0.0
  %463 = vmatpush1.msra.mxu0 0.0
  %464 = vmatprep.subr.mxu0 0.0
  %465 = vmatpush1.msra.mxu0 0.0
  %466 = vmatprep.subr.mxu0 0.0
  %467 = vmatpush1.msra.mxu0 0.0
  %468 = vmatprep.subr.mxu0 0.0
  %469 = vmatpush1.msra.mxu0 0.0
  %470 = vmatprep.subr.mxu0 0.0
  %471 = vmatpush1.msra.mxu0 0.0
  %472 = vmatprep.subr.mxu0 0.0
  %473 = vmatpush1.msra.mxu0 0.0
  %474 = vmatprep.subr.mxu0 0.0
  %475 = vmatpush1.msra.mxu0 0.0
  %476 = vmatprep.subr.mxu0 0.0
  %477 = vmatpush1.msra.mxu0 0.0
  %478 = vmatprep.subr.mxu0 0.0
  %479 = vmatpush1.msra.mxu0 0.0
  %480 = vmatprep.subr.mxu0 0.0
  %481 = vmatpush1.msra.mxu0 0.0
  %482 = vmatprep.subr.mxu0 0.0
  %483 = vmatpush1.msra.mxu0 0.0
  %484 = vmatprep.subr.mxu0 0.0
  %485 = vmatpush1.msra.mxu0 0.0
  %486 = vmatprep.subr.mxu0 0.0
  %487 = vmatpush1.msra.mxu0 0.0
  %488 = vmatprep.subr.mxu0 0.0
  %489 = vmatpush1.msra.mxu0 0.0
  %490 = vmatprep.mubr.f32.mxu0 0.0
  %491 = vmatmul.mubr.f32.gmra.mrb[0].mxu0 %v422
  %v492 = vpop.f32.mrb[0].mxu0
  %v493 = vadd.f32 0.0, %v492
  %v494 = vpop.f32.mrb[0].mxu0
  %495 = vmatprep.mubr.f32.mxu0 0.0
  %496 = vmatmul.mubr.f32.gmra.mrb[0].mxu0 %v424
  %v497 = vpop.f32.mrb[0].mxu0
  %v498 = vadd.f32 0.0, %v497
  %v499 = vpop.f32.mrb[0].mxu0
  %500 = vdwg.mxu0
  %502 = vrot.lane.b32.xlu0 %v498, 64
  %v503 = vpop.permute.xlu0 %502
  %v505 = vsub.f32 %v493, %v503
  %v506 = vadd.f32 %v493, %v503
  %vm507 = vcmask 523264
  %508 = vst.msk [vmem:[%s3 + $0x8] sm:$0xff] %vm507, %v505
  %510 = vrot.lane.b32.xlu0 %v506, 64
  %v511 = vpop.permute.xlu0 %510
  %513 = vst.msk [vmem:[%s3 + $0x18] sm:$0xff] %vm507, %v511
  %vm514 = vcmask 1048064
  %515 = vst.msk [vmem:[%s3 + $0x8] sm:$0xff] %vm514, 0.0
  %516 = vst.msk [vmem:[%s3 + $0x18] sm:$0xff] %vm514, 0.0
  // Predicated region
  $region14: #{channel_forward.1} parent=0 // pred_check
    _
  $region15: #{channel_forward.1} parent=0 // pred_check_branch
    %518 = sbr.rel (0) target = $region17
  $region16: #{channel_forward.1} parent=0 // pred_region
    _
  $region17: #{channel_forward.1} parent=0 // pred_fallthru
    _
  // Predicated region
  $region18: #{channel_forward.1} parent=0 // pred_check
    _
  $region19: #{channel_forward.1} parent=0 // pred_check_branch
    %520 = sbr.rel (0) target = $region21
  $region20: #{channel_forward.1} parent=0 // pred_region
    _
  $region21: #{channel_forward.1} parent=0 // pred_fallthru
    _

</llo_original>
